<compile_context>
chip_gen: v6e
topology: v6e:2x2x1
jax: 0.10.0
libtpu: 0.0.40
codegen_flags: <defaults>
</compile_context>

<pallas_src>
import jax
import jax.numpy as jnp
from jax.experimental import pallas as pl
from jax.experimental.pallas import tpu as pltpu

_EPS = 1e-6  # same default eps as torch.nn.functional.pairwise_distance


def _center_dist_kernel(labels_ref, centers_ref, batch_ref, dist_ref):
    """Per-tile kernel: fused gather + L2 distance.

    labels_ref:  (tile_B, 1) int32 in VMEM
    centers_ref: (C, D) resident in VMEM (same block every grid step)
    batch_ref:   (tile_B, D) in VMEM (native dtype)
    dist_ref:    (tile_B, 1) float32 out
    """
    labels = labels_ref[...]                               # (tile_B, 1) int32
    centers = centers_ref[...].astype(jnp.float32)         # (C, D) f32
    x2 = batch_ref[...].astype(jnp.float32)                # (tile_B, D) f32

    tile_b = labels.shape[0]
    num_classes = centers.shape[0]

    # Gather center rows via one-hot matmul on the MXU (robust TPU gather).
    class_ids = jax.lax.broadcasted_iota(jnp.int32, (tile_b, num_classes), 1)
    onehot = (labels == class_ids).astype(jnp.float32)     # (tile_B, C)
    x1 = jnp.dot(onehot, centers, preferred_element_type=jnp.float32)

    diff = x1 - x2 + _EPS                                  # VPU elementwise
    sq = jnp.sum(diff * diff, axis=-1, keepdims=True)      # (tile_B, 1)
    dist_ref[...] = jnp.sqrt(sq)


def center_loss(center_list, batch_center_vecs, gt_labels, *, tile_b=None):
    """Pallas equivalent of Center.forward.

    center_list:        (C, D) float array of per-class centers.
    batch_center_vecs:  (B, D) float array of per-sample center vectors.
    gt_labels:          (B,)   int class indices.
    Returns a scalar float32 loss.
    """
    num_classes, dim = center_list.shape
    batch, dim2 = batch_center_vecs.shape
    assert dim == dim2, (center_list.shape, batch_center_vecs.shape)

    itemsize = jnp.dtype(batch_center_vecs.dtype).itemsize
    if tile_b is None:
        # Budget ~8 MiB for the double-buffered batch tile (safe for v7x's
        # 32 MiB scoped VMEM; v5e/v6e have more headroom).
        budget = 8 * 1024 * 1024
        cap = max(8, budget // (2 * dim * itemsize))
        tile_b = int(min(512, cap))
    # Never tile wider than the (8-rounded) batch itself.
    tile_b = min(tile_b, ((batch + 7) // 8) * 8)
    tile_b = max(8, (tile_b // 8) * 8)

    b_padded = ((batch + tile_b - 1) // tile_b) * tile_b
    pad = b_padded - batch
    if pad:
        batch_center_vecs = jnp.pad(batch_center_vecs, ((0, pad), (0, 0)))
        gt_labels = jnp.pad(gt_labels, ((0, pad),))
    labels2d = gt_labels.astype(jnp.int32).reshape(b_padded, 1)

    grid = (b_padded // tile_b,)

    dists = pl.pallas_call(
        _center_dist_kernel,
        out_shape=jax.ShapeDtypeStruct((b_padded, 1), jnp.float32),
        grid=grid,
        in_specs=[
            # per-tile labels
            pl.BlockSpec((tile_b, 1), lambda i: (i, 0)),
            # full center table, resident in VMEM across all grid steps
            pl.BlockSpec((num_classes, dim), lambda i: (0, 0)),
            # per-tile batch center vectors (native dtype over HBM)
            pl.BlockSpec((tile_b, dim), lambda i: (i, 0)),
        ],
        out_specs=pl.BlockSpec((tile_b, 1), lambda i: (i, 0)),
        compiler_params=pltpu.CompilerParams(
            dimension_semantics=("parallel",),
        ),
    )(labels2d, center_list, batch_center_vecs)

    # Tiny final reduction (and padded-row discard) in plain JAX.
    return jnp.mean(dists[:batch, 0])


def _reference(center_list, batch_center_vecs, gt_labels):
    # Pure-JAX reference mirroring F.pairwise_distance(..., p=2).mean().
    x1 = center_list[gt_labels].astype(jnp.float32)
    x2 = batch_center_vecs.astype(jnp.float32)
    diff = x1 - x2 + _EPS
    return jnp.mean(jnp.sqrt(jnp.sum(diff * diff, axis=-1)))


if __name__ == "__main__":
    key = jax.random.PRNGKey(0)
    k1, k2, k3, k4, k5, k6 = jax.random.split(key, 6)

    # Test 1: shapes consistent with the module (small demo sizes).
    num_classes, batch, dim = 10, 8, 32
    center_list = jax.random.normal(k1, (num_classes, dim), dtype=jnp.float32)
    batch_center_vecs = jax.random.normal(k2, (batch, dim), dtype=jnp.float32)
    gt_labels = jax.random.randint(k3, (batch,), 0, num_classes, dtype=jnp.int32)

    loss = center_loss(center_list, batch_center_vecs, gt_labels)
    jax.block_until_ready(loss)
    ref = _reference(center_list, batch_center_vecs, gt_labels)
    assert jnp.allclose(loss, ref, rtol=1e-5, atol=1e-5), (loss, ref)

    # Test 2: ragged batch (not a multiple of 8) to exercise padding path.
    num_classes2, batch2, dim2 = 7, 13, 32
    center_list2 = jax.random.normal(k4, (num_classes2, dim2), dtype=jnp.float32)
    batch_vecs2 = jax.random.normal(k5, (batch2, dim2), dtype=jnp.float32)
    gt_labels2 = jax.random.randint(k6, (batch2,), 0, num_classes2, dtype=jnp.int32)

    loss2 = center_loss(center_list2, batch_vecs2, gt_labels2)
    jax.block_until_ready(loss2)
    ref2 = _reference(center_list2, batch_vecs2, gt_labels2)
    assert jnp.allclose(loss2, ref2, rtol=1e-5, atol=1e-5), (loss2, ref2)

    print("KERNEL_OK")
</pallas_src>

<mosaic_0001>
module attributes {stable_mosaic.version = 11 : i64} {
  func.func @_center_dist_kernel(%arg0: i32, %arg1: memref<8x1xi32, #tpu.memory_space<vmem>>, %arg2: memref<10x32xf32, #tpu.memory_space<vmem>>, %arg3: memref<8x32xf32, #tpu.memory_space<vmem>>, %arg4: memref<8x1xf32, #tpu.memory_space<vmem>>) attributes {dimension_semantics = [#tpu.dimension_semantics<parallel>], iteration_bounds = array<i64: 1>, scalar_prefetch = 0 : i64, scratch_operands = 0 : i64, tpu.core_type = #tpu.core_type<tc>, window_params = [{transform_indices = @transform_0, window_bounds = array<i64: 8, 1>}, {pipeline_mode = #tpu.pipeline_mode<synchronous>, transform_indices = @transform_1, window_bounds = array<i64: 10, 32>}, {transform_indices = @transform_2, window_bounds = array<i64: 8, 32>}, {transform_indices = @transform_3, window_bounds = array<i64: 8, 1>}]} {
    %c0 = arith.constant 0 : index
    %c0_0 = arith.constant 0 : index
    %0 = vector.load %arg1[%c0, %c0_0] : memref<8x1xi32, #tpu.memory_space<vmem>>, vector<8x1xi32>
    %c0_1 = arith.constant 0 : index
    %c0_2 = arith.constant 0 : index
    %1 = vector.load %arg2[%c0_1, %c0_2] : memref<10x32xf32, #tpu.memory_space<vmem>>, vector<10x32xf32>
    %c0_3 = arith.constant 0 : index
    %c0_4 = arith.constant 0 : index
    %2 = vector.load %arg3[%c0_3, %c0_4] : memref<8x32xf32, #tpu.memory_space<vmem>>, vector<8x32xf32>
    %3 = tpu.iota {dimensions = array<i32: 1>} : vector<8x10xi32>
    %4 = vector.broadcast %0 : vector<8x1xi32> to vector<8x10xi32>
    %5 = arith.cmpi eq, %4, %3 : vector<8x10xi32>
    %6 = arith.extui %5 : vector<8x10xi1> to vector<8x10xi32>
    %7 = arith.sitofp %6 : vector<8x10xi32> to vector<8x10xf32>
    %cst = arith.constant dense<0.000000e+00> : vector<8x32xf32>
    %8 = tpu.matmul %7, %1, %cst {dimension_numbers = #tpu.dot_dimension_numbers<[1], [0], [0], [1], [0, 0, 1, 1], [], []>} : vector<8x10xf32>, vector<10x32xf32>, vector<8x32xf32> -> vector<8x32xf32>
    %9 = arith.subf %8, %2 : vector<8x32xf32>
    %cst_5 = arith.constant 9.99999997E-7 : f32
    %10 = vector.broadcast %cst_5 : f32 to vector<8x32xf32>
    %11 = arith.addf %9, %10 : vector<8x32xf32>
    %12 = arith.mulf %11, %11 : vector<8x32xf32>
    %cst_6 = arith.constant dense<0.000000e+00> : vector<8xf32>
    %13 = vector.multi_reduction <add>, %12, %cst_6 [1] : vector<8x32xf32> to vector<8xf32>
    %14 = vector.shape_cast %13 : vector<8xf32> to vector<8x1xf32>
    %15 = math.sqrt %14 : vector<8x1xf32>
    %c0_7 = arith.constant 0 : index
    %c0_8 = arith.constant 0 : index
    %16 = vector.load %arg4[%c0_7, %c0_8] : memref<8x1xf32, #tpu.memory_space<vmem>>, vector<8x1xf32>
    tpu.vector_store %arg4[%c0_7, %c0_8], %15 {strides = array<i32>} : memref<8x1xf32, #tpu.memory_space<vmem>>, vector<8x1xf32>,
    return
  }
  func.func @transform_0(%arg0: i32) -> (i32, i32) {
    %c0_i32 = arith.constant 0 : i32
    %c0_i32_0 = arith.constant 0 : i32
    return %arg0, %c0_i32 : i32, i32
  }
  func.func @transform_1(%arg0: i32) -> (i32, i32) {
    %c0_i32 = arith.constant 0 : i32
    %c0_i32_0 = arith.constant 0 : i32
    %c0_i32_1 = arith.constant 0 : i32
    return %c0_i32, %c0_i32_0 : i32, i32
  }
  func.func @transform_2(%arg0: i32) -> (i32, i32) {
    %c0_i32 = arith.constant 0 : i32
    %c0_i32_0 = arith.constant 0 : i32
    return %arg0, %c0_i32 : i32, i32
  }
  func.func @transform_3(%arg0: i32) -> (i32, i32) {
    %c0_i32 = arith.constant 0 : i32
    %c0_i32_0 = arith.constant 0 : i32
    return %arg0, %c0_i32 : i32, i32
  }
}

</mosaic_0001>

<llo_original>
// kernel: tpu_custom_call.1
$region0: #{tpu_custom_call.1}
  #allocation0 [shape = 'u32[]', space=smem, size = 0x4, offset = 0x4, fixed_abs, tag = 'smem constant byte address 0x4 - core index']
  #allocation1 [shape = 'u32[144,128]{1,0:T(1,128)}', space=vmem, size = 0x12000, scoped, tag = 'internal scratch']
  %s0 = inlined_call_operand.vmem [shape: s32[8,1], index: 0, kind: input, shape index: {}]
  %s1 = inlined_call_operand.hbm [shape: f32[10,32], index: 1, kind: input, shape index: {}]
  %s2 = inlined_call_operand.vmem [shape: f32[8,32], index: 2, kind: input, shape index: {}]
  %s3 = inlined_call_operand.vmem [shape: f32[8,1], index: 3, kind: output, shape index: {}]
  %s4 = sld [smem:[#allocation0]]
  $region26: #{tpu_custom_call.1} parent=0
    _
  %s6 = ssub.s32 1, %s4
  %s7 = scalar_select 0, %s6, %s4
  $region1: #{tpu_custom_call.1} parent=0
    #allocation2 [shape = 'u8[8192]{0}', space=vmem, size = 0x2000, scoped, tag = 'input window, operand 1, single buffered']
    #allocation3 [shape = 's32[1]{0}', space=sflag, size = 0x4, scoped, tag = 'scoped memory for tpu_custom_call.1']
    %8 = vsyncpa [#allocation3], 0
    // Predicated region
    $region2: #{tpu_custom_call.1} parent=1 // pred_check
      _
    $region3: #{tpu_custom_call.1} parent=1 // pred_check_branch
      %10 = sbr.rel (0) target = $region5
    $region4: #{tpu_custom_call.1} parent=1 // pred_region
      _
    $region5: #{tpu_custom_call.1} parent=1 // pred_fallthru
      _
    // Predicated region
    $region6: #{tpu_custom_call.1} parent=1 // pred_check
      _
    $region7: #{tpu_custom_call.1} parent=1 // pred_check_branch
      %12 = sbr.rel (0) target = $region9
    $region8: #{tpu_custom_call.1} parent=1 // pred_region
      %s14 = ssub.s32 256, 256
      %15 = vsyncadd [#allocation3], %s14
      %s16 = sshll.u32 [#allocation2], 4
      %s17 = int_to_ptr.vmem [resolvable:$true] %s16
      %22 = dma.hbm_to_vmem [thread:$0]  %s1, 256, %s17, [#allocation3], 128, 128, 8
    $region9: #{tpu_custom_call.1} parent=1 // pred_fallthru
      _
    // Predicated region
    $region10: #{tpu_custom_call.1} parent=1 // pred_check
      _
    $region11: #{tpu_custom_call.1} parent=1 // pred_check_branch
      %24 = sbr.rel (0) target = $region13
    $region12: #{tpu_custom_call.1} parent=1 // pred_region
      _
    $region13: #{tpu_custom_call.1} parent=1 // pred_fallthru
      _
    // Predicated region
    $region14: #{tpu_custom_call.1} parent=1 // pred_check
      _
    $region15: #{tpu_custom_call.1} parent=1 // pred_check_branch
      %26 = sbr.rel (0) target = $region17
    $region16: #{tpu_custom_call.1} parent=1 // pred_region
      %27 = dma.done [#allocation3], 256
    $region17: #{tpu_custom_call.1} parent=1 // pred_fallthru
      _
    %v28 = vld [vmem:[%s0] sm:$0xff]
    %v29 = vld [vmem:[#allocation2] sm:$0xff]
    %v30 = vld [vmem:[#allocation2 + $0x8] sm:$0x3]
    %v31 = vld [vmem:[%s2] sm:$0xff]
    %v32 = vlaneseq
    %v33 = vand.u32 %v32, 127
    %34 = vset.pattern.permute.xlu0 0
    %35 = vperm.xlu0 %34, %v28
    %v36 = vpop.permute.xlu0 %35
    %vm37 = vcmp.eq.s32.totalorder %v36, %v33
    %v38 = vsel %vm37, 1, 0
    %v39 = vcvt.s32.f32 %v38
    %vm40 = vcmask 80896
    %v42 = vsel %vm40, %v39, 0
    %vm44 = vcmask 1041408
    %v46 = vsel %vm44, %v30, 0
    %48 = vmatprep.subr.mxu0 0.0
    %49 = vmatpush1.msra.mxu0 0.0
    %50 = vmatprep.subr.mxu0 0.0
    %51 = vmatpush1.msra.mxu0 0.0
    %52 = vmatprep.subr.mxu0 0.0
    %53 = vmatpush1.msra.mxu0 0.0
    %54 = vmatprep.subr.mxu0 0.0
    %55 = vmatpush1.msra.mxu0 0.0
    %56 = vmatprep.subr.mxu0 0.0
    %57 = vmatpush1.msra.mxu0 0.0
    %58 = vmatprep.subr.mxu0 0.0
    %59 = vmatpush1.msra.mxu0 0.0
    %60 = vmatprep.subr.mxu0 0.0
    %61 = vmatpush1.msra.mxu0 0.0
    %62 = vmatprep.subr.mxu0 0.0
    %63 = vmatpush1.msra.mxu0 0.0
    %64 = vmatprep.subr.mxu0 0.0
    %65 = vmatpush1.msra.mxu0 0.0
    %66 = vmatprep.subr.mxu0 0.0
    %67 = vmatpush1.msra.mxu0 0.0
    %68 = vmatprep.subr.mxu0 0.0
    %69 = vmatpush1.msra.mxu0 0.0
    %70 = vmatprep.subr.mxu0 0.0
    %71 = vmatpush1.msra.mxu0 0.0
    %72 = vmatprep.subr.mxu0 0.0
    %73 = vmatpush1.msra.mxu0 0.0
    %74 = vmatprep.subr.mxu0 0.0
    %75 = vmatpush1.msra.mxu0 0.0
    %76 = vmatprep.subr.mxu0 0.0
    %77 = vmatpush1.msra.mxu0 %v46
    %78 = vmatprep.subr.mxu0 0.0
    %79 = vmatpush1.msra.mxu0 %v29
    %80 = vmatprep.subr.mxu0 0.0
    %81 = vmatpush2.msra.mxu0 0.0
    %82 = vmatprep.subr.mxu0 0.0
    %83 = vmatpush2.msra.mxu0 0.0
    %84 = vmatprep.subr.mxu0 0.0
    %85 = vmatpush2.msra.mxu0 0.0
    %86 = vmatprep.subr.mxu0 0.0
    %87 = vmatpush2.msra.mxu0 0.0
    %88 = vmatprep.subr.mxu0 0.0
    %89 = vmatpush2.msra.mxu0 0.0
    %90 = vmatprep.subr.mxu0 0.0
    %91 = vmatpush2.msra.mxu0 0.0
    %92 = vmatprep.subr.mxu0 0.0
    %93 = vmatpush2.msra.mxu0 0.0
    %94 = vmatprep.subr.mxu0 0.0
    %95 = vmatpush2.msra.mxu0 0.0
    %96 = vmatprep.subr.mxu0 0.0
    %97 = vmatpush2.msra.mxu0 0.0
    %98 = vmatprep.subr.mxu0 0.0
    %99 = vmatpush2.msra.mxu0 0.0
    %100 = vmatprep.subr.mxu0 0.0
    %101 = vmatpush2.msra.mxu0 0.0
    %102 = vmatprep.subr.mxu0 0.0
    %103 = vmatpush2.msra.mxu0 0.0
    %104 = vmatprep.subr.mxu0 0.0
    %105 = vmatpush2.msra.mxu0 0.0
    %106 = vmatprep.subr.mxu0 0.0
    %107 = vmatpush2.msra.mxu0 0.0
    %108 = vmatprep.subr.mxu0 0.0
    %109 = vmatpush2.msra.mxu0 0.0
    %110 = vmatprep.subr.mxu0 0.0
    %111 = vmatpush2.msra.mxu0 0.0
    %112 = vmatprep.mubr.f32.mxu0 0.0
    %113 = vmatmul.mubr.f32.gmra.mxu0 %v42
    %v114 = vpop.f32.mrf.mxu0
    %v115 = vadd.f32 0.0, %v114
    %v116 = vpop.f32.mrf.mxu0
    %117 = vdwg.mxu0
    %v118 = vsub.f32 %v115, %v31
    %v119 = vadd.f32 %v118, 1e-06
    %v120 = vmul.f32 %v119, %v119
    %vm121 = vcmask 261120
    %v122 = vsel %vm121, %v120, 0.0
    %123 = vadd.xlane.f32.xlu0 %v122
    %v124 = vpop.xlane.xlu0 %123
    %v125 = vrsqrt.pop %v124
    %v126 = vmul.f32 %v124, %v125
    %vm127 = vcmp.eq.f32.partialorder %v124, inf
    %v128 = vsel %vm127, %v124, %v126
    %vm129 = vcmp.eq.f32.partialorder %v124, 0.0
    %v130 = vand.u32 %v124, 2147483648
    %v131 = vsel %vm129, %v130, %v128
    %vm132 = vcmask 7168
    %133 = vst.msk [vmem:[%s3] sm:$0xff] %vm132, %v131
    // Predicated region
    $region18: #{tpu_custom_call.1} parent=1 // pred_check
      _
    $region19: #{tpu_custom_call.1} parent=1 // pred_check_branch
      %135 = sbr.rel (0) target = $region21
    $region20: #{tpu_custom_call.1} parent=1 // pred_region
      _
    $region21: #{tpu_custom_call.1} parent=1 // pred_fallthru
      _
    // Predicated region
    $region22: #{tpu_custom_call.1} parent=1 // pred_check
      _
    $region23: #{tpu_custom_call.1} parent=1 // pred_check_branch
      %137 = sbr.rel (0) target = $region25
    $region24: #{tpu_custom_call.1} parent=1 // pred_region
      _
    $region25: #{tpu_custom_call.1} parent=1 // pred_fallthru
      _
    %138 = vsyncpa [#allocation3], 1

</llo_original>
